<compile_context>
chip_gen: v6e
topology: v6e:2x2x1
jax: 0.10.0
libtpu: 0.0.40
codegen_flags: <defaults>
</compile_context>

<pallas_src>
import functools

import jax
import jax.numpy as jnp
from jax import lax
from jax.experimental import pallas as pl
from jax.experimental.pallas import tpu as pltpu

_LN_EPS = 1e-5
_PMAX = 0.5
_PMIN = 0.01
_HEAD_PAD = 128          # lane-dense fused-head output width (>= n_cont + n_disc)
_MAX_BATCH_TILE = 1024   # batch tile cap (sweepable 512/1024/2048); fits v7x 64 MiB VMEM


def _round_up8(n):
    return -(-n // 8) * 8


def _layer_norm(h, gamma, beta):
    mu = jnp.mean(h, axis=-1, keepdims=True)
    d = h - mu
    var = jnp.mean(d * d, axis=-1, keepdims=True)
    return d * lax.rsqrt(var + _LN_EPS) * gamma + beta


def _actor_kernel(use_grad_inv,
                  state_ref,
                  w1_ref, b1_ref, g1_ref, be1_ref,
                  w2_ref, b2_ref, g2_ref, be2_ref,
                  wh_ref, bh_ref, mask_ref,
                  out_ref):
    # Matmul operand dtype follows the (pre-cast) weights; accumulation,
    # LayerNorm, ReLU and the head affine stay in f32.
    mm_dtype = w1_ref.dtype

    x = state_ref[...].astype(mm_dtype)

    # fc1 -> LayerNorm -> relu
    h = jnp.dot(x, w1_ref[...], preferred_element_type=jnp.float32) + b1_ref[...]
    h = _layer_norm(h, g1_ref[...], be1_ref[...])
    h = jnp.maximum(h, 0.0)

    # fc2 -> LayerNorm -> relu
    h = jnp.dot(h.astype(mm_dtype), w2_ref[...],
                preferred_element_type=jnp.float32) + b2_ref[...]
    h = _layer_norm(h, g2_ref[...], be2_ref[...])
    h = jnp.maximum(h, 0.0)

    # Fused (cont | disc) head, zero-padded to 128 lanes -> one matmul, one
    # unmasked lane-dense store.
    c = jnp.dot(h.astype(mm_dtype), wh_ref[...],
                preferred_element_type=jnp.float32) + bh_ref[...]
    if use_grad_inv:
        # pmin + 0.5*(tanh(c)+1)*(pmax-pmin)  ==  tanh(c)*a + b   (single FMA)
        a = 0.5 * (_PMAX - _PMIN)
        b = _PMIN + a
        squashed = jnp.tanh(c) * a + b
        m = mask_ref[...]                      # (1, 128) f32: 1.0 on cont cols
        c = c + m * (squashed - c)             # squash only cont columns
    out_ref[...] = c.astype(out_ref.dtype)


def prepare_actor_params(params, *, use_bf16=False):
    """One-time parameter preprocessing for the kernel.

    Builds the fused/padded head (wc|wd -> 128 lanes), the cont-column mask,
    and pre-casts matmul weights to bf16 if requested.  Call once, reuse across
    forward calls.
    """
    fc2 = params["w2"].shape[1]
    n_cont = params["wc"].shape[1]
    n_disc = params["wd"].shape[1]
    n_head = n_cont + n_disc
    assert n_head <= _HEAD_PAD

    wh = jnp.zeros((fc2, _HEAD_PAD), jnp.float32).at[:, :n_head].set(
        jnp.concatenate([params["wc"], params["wd"]], axis=1))
    bh = jnp.zeros((1, _HEAD_PAD), jnp.float32).at[:, :n_head].set(
        jnp.concatenate([params["bc"], params["bd"]], axis=1))
    mask = (jnp.arange(_HEAD_PAD)[None, :] < n_cont).astype(jnp.float32)

    mm_dtype = jnp.bfloat16 if use_bf16 else jnp.float32
    return dict(
        w1=params["w1"].astype(mm_dtype), b1=params["b1"],
        g1=params["g1"], be1=params["be1"],
        w2=params["w2"].astype(mm_dtype), b2=params["b2"],
        g2=params["g2"], be2=params["be2"],
        wh=wh.astype(mm_dtype), bh=bh,
        mask=mask,
        n_cont=n_cont, n_disc=n_disc,
    )


def actor_forward(prep, state, *, use_grad_inv=False, out_dtype=jnp.bfloat16):
    """ActorNetwork forward pass as a single batch-tiled Pallas kernel.

    `prep` is the output of prepare_actor_params().  Returns (cont, disc),
    matching the PyTorch module; result dtype is `out_dtype` (bf16 default
    halves the dominant HBM writeback of the padded head slab).
    """
    B, in_dim = state.shape
    n_cont, n_disc = prep["n_cont"], prep["n_disc"]
    n_head = n_cont + n_disc

    # Batch tile: tiny batches -> single 8-sublane-aligned tile; larger batches
    # -> >=2 tiles (keeps both v7x TensorCores busy), capped at _MAX_BATCH_TILE
    # to amortize per-grid-step overhead.
    if B <= 16:
        tb = max(8, _round_up8(B))
    else:
        tb = min(_MAX_BATCH_TILE, _round_up8(pl.cdiv(B, 2)))
    pad_b = (-B) % tb
    state_p = jnp.pad(state, ((0, pad_b), (0, 0))) if pad_b else state
    bp = B + pad_b
    grid = (bp // tb,)

    tiled = lambda i: (i, 0)       # batch-tiled arrays
    resident = lambda i: (0, 0)    # weights stay resident across batch tiles

    args = (
        state_p,
        prep["w1"], prep["b1"], prep["g1"], prep["be1"],
        prep["w2"], prep["b2"], prep["g2"], prep["be2"],
        prep["wh"], prep["bh"], prep["mask"],
    )
    in_specs = [pl.BlockSpec((tb, in_dim), tiled)]
    in_specs += [pl.BlockSpec(a.shape, resident) for a in args[1:]]

    out = pl.pallas_call(
        functools.partial(_actor_kernel, use_grad_inv),
        out_shape=jax.ShapeDtypeStruct((bp, _HEAD_PAD), out_dtype),
        grid=grid,
        in_specs=in_specs,
        out_specs=pl.BlockSpec((tb, _HEAD_PAD), tiled),
        compiler_params=pltpu.CompilerParams(
            dimension_semantics=("parallel",)),
    )(*args)

    cont = out[:B, :n_cont]
    disc = out[:B, n_cont:n_head]
    return cont, disc


def init_actor_params(key, input_dim, fc1_dims, fc2_dims, n_cont, n_disc):
    """Deterministic PyTorch-style init (uniform +/- 1/sqrt(fan_in))."""
    def linear(key, fan_in, fan_out):
        kw, kb = jax.random.split(key)
        bound = 1.0 / jnp.sqrt(fan_in)
        # Stored as (in, out) -- transposed relative to nn.Linear.weight.
        w = jax.random.uniform(kw, (fan_in, fan_out), jnp.float32, -bound, bound)
        b = jax.random.uniform(kb, (1, fan_out), jnp.float32, -bound, bound)
        return w, b

    k1, k2, k3, k4 = jax.random.split(key, 4)
    w1, b1 = linear(k1, input_dim, fc1_dims)
    w2, b2 = linear(k2, fc1_dims, fc2_dims)
    wc, bc = linear(k3, fc2_dims, n_cont)
    wd, bd = linear(k4, fc2_dims, n_disc)
    return dict(
        w1=w1, b1=b1,
        g1=jnp.ones((1, fc1_dims), jnp.float32),    # LayerNorm default weight
        be1=jnp.zeros((1, fc1_dims), jnp.float32),  # LayerNorm default bias
        w2=w2, b2=b2,
        g2=jnp.ones((1, fc2_dims), jnp.float32),
        be2=jnp.zeros((1, fc2_dims), jnp.float32),
        wc=wc, bc=bc,
        wd=wd, bd=bd,
    )


def actor_forward_ref(params, state, *, use_grad_inv=False, use_bf16=False):
    """Pure-JAX reference for correctness checking."""
    mm = jnp.bfloat16 if use_bf16 else jnp.float32

    def mdot(a, b):
        return jnp.dot(a.astype(mm), b.astype(mm),
                       preferred_element_type=jnp.float32)

    h = mdot(state, params["w1"]) + params["b1"]
    h = _layer_norm(h, params["g1"], params["be1"])
    h = jnp.maximum(h, 0.0)
    h = mdot(h, params["w2"]) + params["b2"]
    h = _layer_norm(h, params["g2"], params["be2"])
    h = jnp.maximum(h, 0.0)
    c = mdot(h, params["wc"]) + params["bc"]
    if use_grad_inv:
        c = _PMIN + 0.5 * (jnp.tanh(c) + 1.0) * (_PMAX - _PMIN)
    d = mdot(h, params["wd"]) + params["bd"]
    return c, d


def _close(a, b, atol, rtol):
    return bool(jnp.allclose(jnp.asarray(a, jnp.float32),
                             jnp.asarray(b, jnp.float32), atol=atol, rtol=rtol))


if __name__ == "__main__":
    # Small shapes consistent with the module:
    #   input_dims=(16,), fc1_dims=64, fc2_dims=32, n_actions_cont=4, n_actions_disc=6
    B, IN, FC1, FC2, NC, ND = 2, 16, 64, 32, 4, 6

    key = jax.random.PRNGKey(0)
    kp, ks, ks_big = jax.random.split(key, 3)
    params = init_actor_params(kp, IN, FC1, FC2, NC, ND)
    state = jax.random.normal(ks, (B, IN), jnp.float32)

    prep_f32 = prepare_actor_params(params, use_bf16=False)
    prep_bf16 = prepare_actor_params(params, use_bf16=True)

    ok = True

    # 1) f32 matmul operands, f32 output: strict check.
    for gi in (False, True):
        cont, disc = actor_forward(prep_f32, state, use_grad_inv=gi,
                                   out_dtype=jnp.float32)
        jax.block_until_ready((cont, disc))
        cr, dr = actor_forward_ref(params, state, use_grad_inv=gi)
        ok &= _close(cont, cr, 1e-4, 1e-4)
        ok &= _close(disc, dr, 1e-4, 1e-4)

    # 2) bf16 matmul operands (pre-cast weights), f32 output.
    for gi in (False, True):
        cont, disc = actor_forward(prep_bf16, state, use_grad_inv=gi,
                                   out_dtype=jnp.float32)
        jax.block_until_ready((cont, disc))
        cr, dr = actor_forward_ref(params, state, use_grad_inv=gi, use_bf16=True)
        ok &= _close(cont, cr, 2e-3, 2e-3)
        ok &= _close(disc, dr, 2e-3, 2e-3)

    # 3) bf16 matmul operands + bf16 output (default fast path).
    for gi in (False, True):
        cont, disc = actor_forward(prep_bf16, state, use_grad_inv=gi)
        jax.block_until_ready((cont, disc))
        cr, dr = actor_forward_ref(params, state, use_grad_inv=gi, use_bf16=True)
        ok &= _close(cont, cr, 2e-2, 2e-2)
        ok &= _close(disc, dr, 2e-2, 2e-2)

    # 4) Multi-tile / padded-batch path (exercises >=2 grid tiles + batch pad).
    state_big = jax.random.normal(ks_big, (300, IN), jnp.float32)
    cont, disc = actor_forward(prep_f32, state_big, use_grad_inv=True,
                               out_dtype=jnp.float32)
    jax.block_until_ready((cont, disc))
    cr, dr = actor_forward_ref(params, state_big, use_grad_inv=True)
    ok &= _close(cont, cr, 1e-4, 1e-4)
    ok &= _close(disc, dr, 1e-4, 1e-4)

    if ok:
        print("KERNEL_OK")
    else:
        print("KERNEL_MISMATCH")
</pallas_src>

<mosaic_0001>
module attributes {stable_mosaic.version = 11 : i64} {
  func.func @_actor_kernel(%arg0: i32, %arg1: memref<8x16xf32, #tpu.memory_space<vmem>>, %arg2: memref<16x64xf32, #tpu.memory_space<vmem>>, %arg3: memref<1x64xf32, #tpu.memory_space<vmem>>, %arg4: memref<1x64xf32, #tpu.memory_space<vmem>>, %arg5: memref<1x64xf32, #tpu.memory_space<vmem>>, %arg6: memref<64x32xf32, #tpu.memory_space<vmem>>, %arg7: memref<1x32xf32, #tpu.memory_space<vmem>>, %arg8: memref<1x32xf32, #tpu.memory_space<vmem>>, %arg9: memref<1x32xf32, #tpu.memory_space<vmem>>, %arg10: memref<32x128xf32, #tpu.memory_space<vmem>>, %arg11: memref<1x128xf32, #tpu.memory_space<vmem>>, %arg12: memref<1x128xf32, #tpu.memory_space<vmem>>, %arg13: memref<8x128xf32, #tpu.memory_space<vmem>>) attributes {dimension_semantics = [#tpu.dimension_semantics<parallel>], iteration_bounds = array<i64: 1>, scalar_prefetch = 0 : i64, scratch_operands = 0 : i64, tpu.core_type = #tpu.core_type<tc>, window_params = [{transform_indices = @transform_0, window_bounds = array<i64: 8, 16>}, {pipeline_mode = #tpu.pipeline_mode<synchronous>, transform_indices = @transform_1, window_bounds = array<i64: 16, 64>}, {pipeline_mode = #tpu.pipeline_mode<synchronous>, transform_indices = @transform_2, window_bounds = array<i64: 1, 64>}, {pipeline_mode = #tpu.pipeline_mode<synchronous>, transform_indices = @transform_3, window_bounds = array<i64: 1, 64>}, {pipeline_mode = #tpu.pipeline_mode<synchronous>, transform_indices = @transform_4, window_bounds = array<i64: 1, 64>}, {pipeline_mode = #tpu.pipeline_mode<synchronous>, transform_indices = @transform_5, window_bounds = array<i64: 64, 32>}, {pipeline_mode = #tpu.pipeline_mode<synchronous>, transform_indices = @transform_6, window_bounds = array<i64: 1, 32>}, {pipeline_mode = #tpu.pipeline_mode<synchronous>, transform_indices = @transform_7, window_bounds = array<i64: 1, 32>}, {pipeline_mode = #tpu.pipeline_mode<synchronous>, transform_indices = @transform_8, window_bounds = array<i64: 1, 32>}, {pipeline_mode = #tpu.pipeline_mode<synchronous>, transform_indices = @transform_9, window_bounds = array<i64: 32, 128>}, {pipeline_mode = #tpu.pipeline_mode<synchronous>, transform_indices = @transform_10, window_bounds = array<i64: 1, 128>}, {pipeline_mode = #tpu.pipeline_mode<synchronous>, transform_indices = @transform_11, window_bounds = array<i64: 1, 128>}, {transform_indices = @transform_12, window_bounds = array<i64: 8, 128>}]} {
    %c0 = arith.constant 0 : index
    %c0_0 = arith.constant 0 : index
    %0 = vector.load %arg1[%c0, %c0_0] : memref<8x16xf32, #tpu.memory_space<vmem>>, vector<8x16xf32>
    %c0_1 = arith.constant 0 : index
    %c0_2 = arith.constant 0 : index
    %1 = vector.load %arg2[%c0_1, %c0_2] : memref<16x64xf32, #tpu.memory_space<vmem>>, vector<16x64xf32>
    %cst = arith.constant dense<0.000000e+00> : vector<8x64xf32>
    %2 = tpu.matmul %0, %1, %cst {dimension_numbers = #tpu.dot_dimension_numbers<[1], [0], [0], [1], [0, 0, 1, 1], [], []>} : vector<8x16xf32>, vector<16x64xf32>, vector<8x64xf32> -> vector<8x64xf32>
    %c0_3 = arith.constant 0 : index
    %c0_4 = arith.constant 0 : index
    %3 = vector.load %arg3[%c0_3, %c0_4] : memref<1x64xf32, #tpu.memory_space<vmem>>, vector<1x64xf32>
    %4 = vector.broadcast %3 : vector<1x64xf32> to vector<8x64xf32>
    %5 = arith.addf %2, %4 : vector<8x64xf32>
    %c0_5 = arith.constant 0 : index
    %c0_6 = arith.constant 0 : index
    %6 = vector.load %arg4[%c0_5, %c0_6] : memref<1x64xf32, #tpu.memory_space<vmem>>, vector<1x64xf32>
    %c0_7 = arith.constant 0 : index
    %c0_8 = arith.constant 0 : index
    %7 = vector.load %arg5[%c0_7, %c0_8] : memref<1x64xf32, #tpu.memory_space<vmem>>, vector<1x64xf32>
    %cst_9 = arith.constant dense<0.000000e+00> : vector<8xf32>
    %8 = vector.multi_reduction <add>, %5, %cst_9 [1] : vector<8x64xf32> to vector<8xf32>
    %9 = vector.shape_cast %8 : vector<8xf32> to vector<8x1xf32>
    %cst_10 = arith.constant 6.400000e+01 : f32
    %10 = vector.broadcast %cst_10 : f32 to vector<8x1xf32>
    %11 = arith.divf %9, %10 : vector<8x1xf32>
    %12 = vector.broadcast %11 : vector<8x1xf32> to vector<8x64xf32>
    %13 = arith.subf %5, %12 : vector<8x64xf32>
    %14 = arith.mulf %13, %13 : vector<8x64xf32>
    %cst_11 = arith.constant dense<0.000000e+00> : vector<8xf32>
    %15 = vector.multi_reduction <add>, %14, %cst_11 [1] : vector<8x64xf32> to vector<8xf32>
    %16 = vector.shape_cast %15 : vector<8xf32> to vector<8x1xf32>
    %cst_12 = arith.constant 6.400000e+01 : f32
    %17 = vector.broadcast %cst_12 : f32 to vector<8x1xf32>
    %18 = arith.divf %16, %17 : vector<8x1xf32>
    %cst_13 = arith.constant 9.99999974E-6 : f32
    %19 = vector.broadcast %cst_13 : f32 to vector<8x1xf32>
    %20 = arith.addf %18, %19 : vector<8x1xf32>
    %21 = math.rsqrt %20 : vector<8x1xf32>
    %22 = vector.broadcast %21 : vector<8x1xf32> to vector<8x64xf32>
    %23 = arith.mulf %13, %22 : vector<8x64xf32>
    %24 = vector.broadcast %6 : vector<1x64xf32> to vector<8x64xf32>
    %25 = arith.mulf %23, %24 : vector<8x64xf32>
    %26 = vector.broadcast %7 : vector<1x64xf32> to vector<8x64xf32>
    %27 = arith.addf %25, %26 : vector<8x64xf32>
    %cst_14 = arith.constant 0.000000e+00 : f32
    %28 = vector.broadcast %cst_14 : f32 to vector<8x64xf32>
    %29 = arith.maximumf %27, %28 : vector<8x64xf32>
    %c0_15 = arith.constant 0 : index
    %c0_16 = arith.constant 0 : index
    %30 = vector.load %arg6[%c0_15, %c0_16] : memref<64x32xf32, #tpu.memory_space<vmem>>, vector<64x32xf32>
    %cst_17 = arith.constant dense<0.000000e+00> : vector<8x32xf32>
    %31 = tpu.matmul %29, %30, %cst_17 {dimension_numbers = #tpu.dot_dimension_numbers<[1], [0], [0], [1], [0, 0, 1, 1], [], []>} : vector<8x64xf32>, vector<64x32xf32>, vector<8x32xf32> -> vector<8x32xf32>
    %c0_18 = arith.constant 0 : index
    %c0_19 = arith.constant 0 : index
    %32 = vector.load %arg7[%c0_18, %c0_19] : memref<1x32xf32, #tpu.memory_space<vmem>>, vector<1x32xf32>
    %33 = vector.broadcast %32 : vector<1x32xf32> to vector<8x32xf32>
    %34 = arith.addf %31, %33 : vector<8x32xf32>
    %c0_20 = arith.constant 0 : index
    %c0_21 = arith.constant 0 : index
    %35 = vector.load %arg8[%c0_20, %c0_21] : memref<1x32xf32, #tpu.memory_space<vmem>>, vector<1x32xf32>
    %c0_22 = arith.constant 0 : index
    %c0_23 = arith.constant 0 : index
    %36 = vector.load %arg9[%c0_22, %c0_23] : memref<1x32xf32, #tpu.memory_space<vmem>>, vector<1x32xf32>
    %cst_24 = arith.constant dense<0.000000e+00> : vector<8xf32>
    %37 = vector.multi_reduction <add>, %34, %cst_24 [1] : vector<8x32xf32> to vector<8xf32>
    %38 = vector.shape_cast %37 : vector<8xf32> to vector<8x1xf32>
    %cst_25 = arith.constant 3.200000e+01 : f32
    %39 = vector.broadcast %cst_25 : f32 to vector<8x1xf32>
    %40 = arith.divf %38, %39 : vector<8x1xf32>
    %41 = vector.broadcast %40 : vector<8x1xf32> to vector<8x32xf32>
    %42 = arith.subf %34, %41 : vector<8x32xf32>
    %43 = arith.mulf %42, %42 : vector<8x32xf32>
    %cst_26 = arith.constant dense<0.000000e+00> : vector<8xf32>
    %44 = vector.multi_reduction <add>, %43, %cst_26 [1] : vector<8x32xf32> to vector<8xf32>
    %45 = vector.shape_cast %44 : vector<8xf32> to vector<8x1xf32>
    %cst_27 = arith.constant 3.200000e+01 : f32
    %46 = vector.broadcast %cst_27 : f32 to vector<8x1xf32>
    %47 = arith.divf %45, %46 : vector<8x1xf32>
    %cst_28 = arith.constant 9.99999974E-6 : f32
    %48 = vector.broadcast %cst_28 : f32 to vector<8x1xf32>
    %49 = arith.addf %47, %48 : vector<8x1xf32>
    %50 = math.rsqrt %49 : vector<8x1xf32>
    %51 = vector.broadcast %50 : vector<8x1xf32> to vector<8x32xf32>
    %52 = arith.mulf %42, %51 : vector<8x32xf32>
    %53 = vector.broadcast %35 : vector<1x32xf32> to vector<8x32xf32>
    %54 = arith.mulf %52, %53 : vector<8x32xf32>
    %55 = vector.broadcast %36 : vector<1x32xf32> to vector<8x32xf32>
    %56 = arith.addf %54, %55 : vector<8x32xf32>
    %cst_29 = arith.constant 0.000000e+00 : f32
    %57 = vector.broadcast %cst_29 : f32 to vector<8x32xf32>
    %58 = arith.maximumf %56, %57 : vector<8x32xf32>
    %c0_30 = arith.constant 0 : index
    %c0_31 = arith.constant 0 : index
    %59 = vector.load %arg10[%c0_30, %c0_31] : memref<32x128xf32, #tpu.memory_space<vmem>>, vector<32x128xf32>
    %cst_32 = arith.constant dense<0.000000e+00> : vector<8x128xf32>
    %60 = tpu.matmul %58, %59, %cst_32 {dimension_numbers = #tpu.dot_dimension_numbers<[1], [0], [0], [1], [0, 0, 1, 1], [], []>} : vector<8x32xf32>, vector<32x128xf32>, vector<8x128xf32> -> vector<8x128xf32>
    %c0_33 = arith.constant 0 : index
    %c0_34 = arith.constant 0 : index
    %61 = vector.load %arg11[%c0_33, %c0_34] : memref<1x128xf32, #tpu.memory_space<vmem>>, vector<1x128xf32>
    %62 = vector.broadcast %61 : vector<1x128xf32> to vector<8x128xf32>
    %63 = arith.addf %60, %62 : vector<8x128xf32>
    %c0_35 = arith.constant 0 : index
    %c0_36 = arith.constant 0 : index
    %64 = vector.load %arg13[%c0_35, %c0_36] : memref<8x128xf32, #tpu.memory_space<vmem>>, vector<8x128xf32>
    tpu.vector_store %arg13[%c0_35, %c0_36], %63 {strides = array<i32>} : memref<8x128xf32, #tpu.memory_space<vmem>>, vector<8x128xf32>,
    return
  }
  func.func @transform_0(%arg0: i32) -> (i32, i32) {
    %c0_i32 = arith.constant 0 : i32
    %c0_i32_0 = arith.constant 0 : i32
    return %arg0, %c0_i32 : i32, i32
  }
  func.func @transform_1(%arg0: i32) -> (i32, i32) {
    %c0_i32 = arith.constant 0 : i32
    %c0_i32_0 = arith.constant 0 : i32
    %c0_i32_1 = arith.constant 0 : i32
    return %c0_i32, %c0_i32_0 : i32, i32
  }
  func.func @transform_2(%arg0: i32) -> (i32, i32) {
    %c0_i32 = arith.constant 0 : i32
    %c0_i32_0 = arith.constant 0 : i32
    %c0_i32_1 = arith.constant 0 : i32
    return %c0_i32, %c0_i32_0 : i32, i32
  }
  func.func @transform_3(%arg0: i32) -> (i32, i32) {
    %c0_i32 = arith.constant 0 : i32
    %c0_i32_0 = arith.constant 0 : i32
    %c0_i32_1 = arith.constant 0 : i32
    return %c0_i32, %c0_i32_0 : i32, i32
  }
  func.func @transform_4(%arg0: i32) -> (i32, i32) {
    %c0_i32 = arith.constant 0 : i32
    %c0_i32_0 = arith.constant 0 : i32
    %c0_i32_1 = arith.constant 0 : i32
    return %c0_i32, %c0_i32_0 : i32, i32
  }
  func.func @transform_5(%arg0: i32) -> (i32, i32) {
    %c0_i32 = arith.constant 0 : i32
    %c0_i32_0 = arith.constant 0 : i32
    %c0_i32_1 = arith.constant 0 : i32
    return %c0_i32, %c0_i32_0 : i32, i32
  }
  func.func @transform_6(%arg0: i32) -> (i32, i32) {
    %c0_i32 = arith.constant 0 : i32
    %c0_i32_0 = arith.constant 0 : i32
    %c0_i32_1 = arith.constant 0 : i32
    return %c0_i32, %c0_i32_0 : i32, i32
  }
  func.func @transform_7(%arg0: i32) -> (i32, i32) {
    %c0_i32 = arith.constant 0 : i32
    %c0_i32_0 = arith.constant 0 : i32
    %c0_i32_1 = arith.constant 0 : i32
    return %c0_i32, %c0_i32_0 : i32, i32
  }
  func.func @transform_8(%arg0: i32) -> (i32, i32) {
    %c0_i32 = arith.constant 0 : i32
    %c0_i32_0 = arith.constant 0 : i32
    %c0_i32_1 = arith.constant 0 : i32
    return %c0_i32, %c0_i32_0 : i32, i32
  }
  func.func @transform_9(%arg0: i32) -> (i32, i32) {
    %c0_i32 = arith.constant 0 : i32
    %c0_i32_0 = arith.constant 0 : i32
    %c0_i32_1 = arith.constant 0 : i32
    return %c0_i32, %c0_i32_0 : i32, i32
  }
  func.func @transform_10(%arg0: i32) -> (i32, i32) {
    %c0_i32 = arith.constant 0 : i32
    %c0_i32_0 = arith.constant 0 : i32
    %c0_i32_1 = arith.constant 0 : i32
    return %c0_i32, %c0_i32_0 : i32, i32
  }
  func.func @transform_11(%arg0: i32) -> (i32, i32) {
    %c0_i32 = arith.constant 0 : i32
    %c0_i32_0 = arith.constant 0 : i32
    %c0_i32_1 = arith.constant 0 : i32
    return %c0_i32, %c0_i32_0 : i32, i32
  }
  func.func @transform_12(%arg0: i32) -> (i32, i32) {
    %c0_i32 = arith.constant 0 : i32
    %c0_i32_0 = arith.constant 0 : i32
    return %arg0, %c0_i32 : i32, i32
  }
}

</mosaic_0001>

<llo_original>
// kernel: tpu_custom_call.1
$region0: #{tpu_custom_call.1}
  #allocation0 [shape = 'u32[]', space=smem, size = 0x4, offset = 0x4, fixed_abs, tag = 'smem constant byte address 0x4 - core index']
  #allocation1 [shape = 'u32[144,128]{1,0:T(1,128)}', space=vmem, size = 0x12000, scoped, tag = 'internal scratch']
  %s0 = inlined_call_operand.vmem [shape: f32[8,16], index: 0, kind: input, shape index: {}]
  %s1 = inlined_call_operand.vmem [shape: f32[16,64], index: 1, kind: input, shape index: {}]
  %s2 = inlined_call_operand.vmem [shape: f32[1,64], index: 2, kind: input, shape index: {}]
  %s3 = inlined_call_operand.vmem [shape: f32[1,64], index: 3, kind: input, shape index: {}]
  %s4 = inlined_call_operand.vmem [shape: f32[1,64], index: 4, kind: input, shape index: {}]
  %s5 = inlined_call_operand.vmem [shape: f32[64,32], index: 5, kind: input, shape index: {}]
  %s6 = inlined_call_operand.vmem [shape: f32[1,32], index: 6, kind: input, shape index: {}]
  %s7 = inlined_call_operand.vmem [shape: f32[1,32], index: 7, kind: input, shape index: {}]
  %s8 = inlined_call_operand.vmem [shape: f32[1,32], index: 8, kind: input, shape index: {}]
  %s9 = inlined_call_operand.vmem [shape: f32[32,128], index: 9, kind: input, shape index: {}]
  %s10 = inlined_call_operand.vmem [shape: f32[1,128], index: 10, kind: input, shape index: {}]
  %s11 = inlined_call_operand.vmem [shape: f32[1,128], index: 11, kind: input, shape index: {}]
  %s12 = inlined_call_operand.hbm [shape: f32[8,128], index: 12, kind: output, shape index: {}]
  %s13 = sld [smem:[#allocation0]]
  $region58: #{tpu_custom_call.1} parent=0
    _
  %s15 = ssub.s32 1, %s13
  %s16 = scalar_select 0, %s15, %s13
  $region1: #{tpu_custom_call.1} parent=0
    #allocation2 [shape = 'u8[4096]{0}', space=vmem, size = 0x1000, scoped, tag = 'output window, operand 0, single buffered']
    #allocation3 [shape = 's32[1]{0}', space=sflag, size = 0x4, scoped, tag = 'scoped memory for tpu_custom_call.1']
    %17 = vsyncpa [#allocation3], 0
    // Predicated region
    $region2: #{tpu_custom_call.1} parent=1 // pred_check
      _
    $region3: #{tpu_custom_call.1} parent=1 // pred_check_branch
      %19 = sbr.rel (0) target = $region5
    $region4: #{tpu_custom_call.1} parent=1 // pred_region
      _
    $region5: #{tpu_custom_call.1} parent=1 // pred_fallthru
      _
    // Predicated region
    $region6: #{tpu_custom_call.1} parent=1 // pred_check
      _
    $region7: #{tpu_custom_call.1} parent=1 // pred_check_branch
      %21 = sbr.rel (0) target = $region9
    $region8: #{tpu_custom_call.1} parent=1 // pred_region
      _
    $region9: #{tpu_custom_call.1} parent=1 // pred_fallthru
      _
    // Predicated region
    $region10: #{tpu_custom_call.1} parent=1 // pred_check
      _
    $region11: #{tpu_custom_call.1} parent=1 // pred_check_branch
      %23 = sbr.rel (0) target = $region13
    $region12: #{tpu_custom_call.1} parent=1 // pred_region
      _
    $region13: #{tpu_custom_call.1} parent=1 // pred_fallthru
      _
    // Predicated region
    $region14: #{tpu_custom_call.1} parent=1 // pred_check
      _
    $region15: #{tpu_custom_call.1} parent=1 // pred_check_branch
      %25 = sbr.rel (0) target = $region17
    $region16: #{tpu_custom_call.1} parent=1 // pred_region
      _
    $region17: #{tpu_custom_call.1} parent=1 // pred_fallthru
      _
    // Predicated region
    $region18: #{tpu_custom_call.1} parent=1 // pred_check
      _
    $region19: #{tpu_custom_call.1} parent=1 // pred_check_branch
      %27 = sbr.rel (0) target = $region21
    $region20: #{tpu_custom_call.1} parent=1 // pred_region
      _
    $region21: #{tpu_custom_call.1} parent=1 // pred_fallthru
      _
    // Predicated region
    $region22: #{tpu_custom_call.1} parent=1 // pred_check
      _
    $region23: #{tpu_custom_call.1} parent=1 // pred_check_branch
      %29 = sbr.rel (0) target = $region25
    $region24: #{tpu_custom_call.1} parent=1 // pred_region
      _
    $region25: #{tpu_custom_call.1} parent=1 // pred_fallthru
      _
    // Predicated region
    $region26: #{tpu_custom_call.1} parent=1 // pred_check
      _
    $region27: #{tpu_custom_call.1} parent=1 // pred_check_branch
      %31 = sbr.rel (0) target = $region29
    $region28: #{tpu_custom_call.1} parent=1 // pred_region
      _
    $region29: #{tpu_custom_call.1} parent=1 // pred_fallthru
      _
    // Predicated region
    $region30: #{tpu_custom_call.1} parent=1 // pred_check
      _
    $region31: #{tpu_custom_call.1} parent=1 // pred_check_branch
      %33 = sbr.rel (0) target = $region33
    $region32: #{tpu_custom_call.1} parent=1 // pred_region
      _
    $region33: #{tpu_custom_call.1} parent=1 // pred_fallthru
      _
    // Predicated region
    $region34: #{tpu_custom_call.1} parent=1 // pred_check
      _
    $region35: #{tpu_custom_call.1} parent=1 // pred_check_branch
      %35 = sbr.rel (0) target = $region37
    $region36: #{tpu_custom_call.1} parent=1 // pred_region
      _
    $region37: #{tpu_custom_call.1} parent=1 // pred_fallthru
      _
    // Predicated region
    $region38: #{tpu_custom_call.1} parent=1 // pred_check
      _
    $region39: #{tpu_custom_call.1} parent=1 // pred_check_branch
      %37 = sbr.rel (0) target = $region41
    $region40: #{tpu_custom_call.1} parent=1 // pred_region
      _
    $region41: #{tpu_custom_call.1} parent=1 // pred_fallthru
      _
    // Predicated region
    $region42: #{tpu_custom_call.1} parent=1 // pred_check
      _
    $region43: #{tpu_custom_call.1} parent=1 // pred_check_branch
      %39 = sbr.rel (0) target = $region45
    $region44: #{tpu_custom_call.1} parent=1 // pred_region
      _
    $region45: #{tpu_custom_call.1} parent=1 // pred_fallthru
      _
    // Predicated region
    $region46: #{tpu_custom_call.1} parent=1 // pred_check
      _
    $region47: #{tpu_custom_call.1} parent=1 // pred_check_branch
      %41 = sbr.rel (0) target = $region49
    $region48: #{tpu_custom_call.1} parent=1 // pred_region
      _
    $region49: #{tpu_custom_call.1} parent=1 // pred_fallthru
      _
    %v42 = vld [vmem:[%s0] sm:$0xff]
    %v43 = vld [vmem:[%s1] sm:$0xff]
    %v44 = vld [vmem:[%s1 + $0x8] sm:$0xff]
    %v45 = vld [vmem:[%s2] sm:$0x1]
    %v47 = vlaneseq
    %v48 = vshrl.u32 %v47, 7
    %v49 = vsub.s32 0, %v48
    %v50 = vrot.slane %v45, %v49
    %vm52 = vcmask 130048
    %v54 = vsel %vm52, %v42, 0
    %56 = vmatprep.subr.mxu0 0.0
    %57 = vmatpush1.msra.mxu0 0.0
    %58 = vmatprep.subr.mxu0 0.0
    %59 = vmatpush1.msra.mxu0 0.0
    %60 = vmatprep.subr.mxu0 0.0
    %61 = vmatpush1.msra.mxu0 0.0
    %62 = vmatprep.subr.mxu0 0.0
    %63 = vmatpush1.msra.mxu0 0.0
    %64 = vmatprep.subr.mxu0 0.0
    %65 = vmatpush1.msra.mxu0 0.0
    %66 = vmatprep.subr.mxu0 0.0
    %67 = vmatpush1.msra.mxu0 0.0
    %68 = vmatprep.subr.mxu0 0.0
    %69 = vmatpush1.msra.mxu0 0.0
    %70 = vmatprep.subr.mxu0 0.0
    %71 = vmatpush1.msra.mxu0 0.0
    %72 = vmatprep.subr.mxu0 0.0
    %73 = vmatpush1.msra.mxu0 0.0
    %74 = vmatprep.subr.mxu0 0.0
    %75 = vmatpush1.msra.mxu0 0.0
    %76 = vmatprep.subr.mxu0 0.0
    %77 = vmatpush1.msra.mxu0 0.0
    %78 = vmatprep.subr.mxu0 0.0
    %79 = vmatpush1.msra.mxu0 0.0
    %80 = vmatprep.subr.mxu0 0.0
    %81 = vmatpush1.msra.mxu0 0.0
    %82 = vmatprep.subr.mxu0 0.0
    %83 = vmatpush1.msra.mxu0 0.0
    %84 = vmatprep.subr.mxu0 0.0
    %85 = vmatpush1.msra.mxu0 %v44
    %86 = vmatprep.subr.mxu0 0.0
    %87 = vmatpush1.msra.mxu0 %v43
    %88 = vmatprep.subr.mxu0 0.0
    %89 = vmatpush2.msra.mxu0 0.0
    %90 = vmatprep.subr.mxu0 0.0
    %91 = vmatpush2.msra.mxu0 0.0
    %92 = vmatprep.subr.mxu0 0.0
    %93 = vmatpush2.msra.mxu0 0.0
    %94 = vmatprep.subr.mxu0 0.0
    %95 = vmatpush2.msra.mxu0 0.0
    %96 = vmatprep.subr.mxu0 0.0
    %97 = vmatpush2.msra.mxu0 0.0
    %98 = vmatprep.subr.mxu0 0.0
    %99 = vmatpush2.msra.mxu0 0.0
    %100 = vmatprep.subr.mxu0 0.0
    %101 = vmatpush2.msra.mxu0 0.0
    %102 = vmatprep.subr.mxu0 0.0
    %103 = vmatpush2.msra.mxu0 0.0
    %104 = vmatprep.subr.mxu0 0.0
    %105 = vmatpush2.msra.mxu0 0.0
    %106 = vmatprep.subr.mxu0 0.0
    %107 = vmatpush2.msra.mxu0 0.0
    %108 = vmatprep.subr.mxu0 0.0
    %109 = vmatpush2.msra.mxu0 0.0
    %110 = vmatprep.subr.mxu0 0.0
    %111 = vmatpush2.msra.mxu0 0.0
    %112 = vmatprep.subr.mxu0 0.0
    %113 = vmatpush2.msra.mxu0 0.0
    %114 = vmatprep.subr.mxu0 0.0
    %115 = vmatpush2.msra.mxu0 0.0
    %116 = vmatprep.subr.mxu0 0.0
    %117 = vmatpush2.msra.mxu0 0.0
    %118 = vmatprep.subr.mxu0 0.0
    %119 = vmatpush2.msra.mxu0 0.0
    %120 = vmatprep.mubr.f32.mxu0 0.0
    %121 = vmatmul.mubr.f32.gmra.mxu0 %v54
    %v122 = vpop.f32.mrf.mxu0
    %v123 = vadd.f32 %v50, %v122
    %v124 = vpop.f32.mrf.mxu0
    %125 = vdwg.mxu0
    %v126 = vld [vmem:[%s3] sm:$0x1]
    %v127 = vld [vmem:[%s4] sm:$0x1]
    %vm128 = vcmask 523264
    %v129 = vsel %vm128, %v123, 0.0
    %130 = vadd.xlane.f32.xlu0 %v129
    %v131 = vpop.xlane.xlu0 %130
    %v132 = vrcp.pop 64.0
    %v133 = vmul.f32 %v131, %v132
    %v134 = vsub.f32 %v123, %v133
    %v135 = vmul.f32 %v134, %v134
    %v136 = vsel %vm128, %v135, 0.0
    %137 = vadd.xlane.f32.xlu0 %v136
    %v138 = vpop.xlane.xlu0 %137
    %v139 = vmul.f32 %v138, %v132
    %v140 = vadd.f32 %v139, 1e-05
    %v141 = vrsqrt.pop %v140
    %v142 = vmul.f32 %v134, %v141
    %v144 = vlaneseq
    %v145 = vshrl.u32 %v144, 7
    %v146 = vsub.s32 0, %v145
    %v147 = vrot.slane %v126, %v146
    %v149 = vmul.f32 %v142, %v147
    %v151 = vlaneseq
    %v152 = vshrl.u32 %v151, 7
    %v153 = vsub.s32 0, %v152
    %v154 = vrot.slane %v127, %v153
    %v156 = vadd.f32 %v149, %v154
    %v157 = vmax.f32 %v156, 0.0
    %v158 = vld [vmem:[%s5] sm:$0xff]
    %v159 = vld [vmem:[%s5 + $0x8] sm:$0xff]
    %v160 = vld [vmem:[%s5 + $0x10] sm:$0xff]
    %v161 = vld [vmem:[%s5 + $0x18] sm:$0xff]
    %v162 = vld [vmem:[%s5 + $0x20] sm:$0xff]
    %v163 = vld [vmem:[%s5 + $0x28] sm:$0xff]
    %v164 = vld [vmem:[%s5 + $0x30] sm:$0xff]
    %v165 = vld [vmem:[%s5 + $0x38] sm:$0xff]
    %v166 = vld [vmem:[%s6] sm:$0x1]
    %v168 = vlaneseq
    %v169 = vshrl.u32 %v168, 7
    %v170 = vsub.s32 0, %v169
    %v171 = vrot.slane %v166, %v170
    %v174 = vsel %vm128, %v157, 0
    %176 = vmatprep.subr.mxu0 0.0
    %177 = vmatpush1.msra.mxu0 0.0
    %178 = vmatprep.subr.mxu0 0.0
    %179 = vmatpush1.msra.mxu0 0.0
    %180 = vmatprep.subr.mxu0 0.0
    %181 = vmatpush1.msra.mxu0 0.0
    %182 = vmatprep.subr.mxu0 0.0
    %183 = vmatpush1.msra.mxu0 0.0
    %184 = vmatprep.subr.mxu0 0.0
    %185 = vmatpush1.msra.mxu0 0.0
    %186 = vmatprep.subr.mxu0 0.0
    %187 = vmatpush1.msra.mxu0 0.0
    %188 = vmatprep.subr.mxu0 0.0
    %189 = vmatpush1.msra.mxu0 0.0
    %190 = vmatprep.subr.mxu0 0.0
    %191 = vmatpush1.msra.mxu0 0.0
    %192 = vmatprep.subr.mxu0 0.0
    %193 = vmatpush1.msra.mxu0 %v165
    %194 = vmatprep.subr.mxu0 0.0
    %195 = vmatpush1.msra.mxu0 %v164
    %196 = vmatprep.subr.mxu0 0.0
    %197 = vmatpush1.msra.mxu0 %v163
    %198 = vmatprep.subr.mxu0 0.0
    %199 = vmatpush1.msra.mxu0 %v162
    %200 = vmatprep.subr.mxu0 0.0
    %201 = vmatpush1.msra.mxu0 %v161
    %202 = vmatprep.subr.mxu0 0.0
    %203 = vmatpush1.msra.mxu0 %v160
    %204 = vmatprep.subr.mxu0 0.0
    %205 = vmatpush1.msra.mxu0 %v159
    %206 = vmatprep.subr.mxu0 0.0
    %207 = vmatpush1.msra.mxu0 %v158
    %208 = vmatprep.subr.mxu0 0.0
    %209 = vmatpush2.msra.mxu0 0.0
    %210 = vmatprep.subr.mxu0 0.0
    %211 = vmatpush2.msra.mxu0 0.0
    %212 = vmatprep.subr.mxu0 0.0
    %213 = vmatpush2.msra.mxu0 0.0
    %214 = vmatprep.subr.mxu0 0.0
    %215 = vmatpush2.msra.mxu0 0.0
    %216 = vmatprep.subr.mxu0 0.0
    %217 = vmatpush2.msra.mxu0 0.0
    %218 = vmatprep.subr.mxu0 0.0
    %219 = vmatpush2.msra.mxu0 0.0
    %220 = vmatprep.subr.mxu0 0.0
    %221 = vmatpush2.msra.mxu0 0.0
    %222 = vmatprep.subr.mxu0 0.0
    %223 = vmatpush2.msra.mxu0 0.0
    %224 = vmatprep.subr.mxu0 0.0
    %225 = vmatpush2.msra.mxu0 0.0
    %226 = vmatprep.subr.mxu0 0.0
    %227 = vmatpush2.msra.mxu0 0.0
    %228 = vmatprep.subr.mxu0 0.0
    %229 = vmatpush2.msra.mxu0 0.0
    %230 = vmatprep.subr.mxu0 0.0
    %231 = vmatpush2.msra.mxu0 0.0
    %232 = vmatprep.subr.mxu0 0.0
    %233 = vmatpush2.msra.mxu0 0.0
    %234 = vmatprep.subr.mxu0 0.0
    %235 = vmatpush2.msra.mxu0 0.0
    %236 = vmatprep.subr.mxu0 0.0
    %237 = vmatpush2.msra.mxu0 0.0
    %238 = vmatprep.subr.mxu0 0.0
    %239 = vmatpush2.msra.mxu0 0.0
    %240 = vmatprep.mubr.f32.mxu0 0.0
    %241 = vmatmul.mubr.f32.gmra.mxu0 %v174
    %v242 = vpop.f32.mrf.mxu0
    %v243 = vadd.f32 %v171, %v242
    %v244 = vpop.f32.mrf.mxu0
    %245 = vdwg.mxu0
    %v246 = vld [vmem:[%s7] sm:$0x1]
    %v247 = vld [vmem:[%s8] sm:$0x1]
    %vm248 = vcmask 261120
    %v249 = vsel %vm248, %v243, 0.0
    %250 = vadd.xlane.f32.xlu0 %v249
    %v251 = vpop.xlane.xlu0 %250
    %v252 = vrcp.pop 32.0
    %v253 = vmul.f32 %v251, %v252
    %v254 = vsub.f32 %v243, %v253
    %v255 = vmul.f32 %v254, %v254
    %v256 = vsel %vm248, %v255, 0.0
    %257 = vadd.xlane.f32.xlu0 %v256
    %v258 = vpop.xlane.xlu0 %257
    %v259 = vmul.f32 %v258, %v252
    %v260 = vadd.f32 %v259, 1e-05
    %v261 = vrsqrt.pop %v260
    %v262 = vmul.f32 %v254, %v261
    %v264 = vlaneseq
    %v265 = vshrl.u32 %v264, 7
    %v266 = vsub.s32 0, %v265
    %v267 = vrot.slane %v246, %v266
    %v269 = vmul.f32 %v262, %v267
    %v271 = vlaneseq
    %v272 = vshrl.u32 %v271, 7
    %v273 = vsub.s32 0, %v272
    %v274 = vrot.slane %v247, %v273
    %v276 = vadd.f32 %v269, %v274
    %v277 = vmax.f32 %v276, 0.0
    %v278 = vld [vmem:[%s9] sm:$0xff]
    %v279 = vld [vmem:[%s9 + $0x8] sm:$0xff]
    %v280 = vld [vmem:[%s9 + $0x10] sm:$0xff]
    %v281 = vld [vmem:[%s9 + $0x18] sm:$0xff]
    %v282 = vld [vmem:[%s10] sm:$0x1]
    %v284 = vlaneseq
    %v285 = vshrl.u32 %v284, 7
    %v286 = vsub.s32 0, %v285
    %v287 = vrot.slane %v282, %v286
    %v290 = vsel %vm248, %v277, 0
    %292 = vmatprep.subr.mxu0 0.0
    %293 = vmatpush1.msra.mxu0 0.0
    %294 = vmatprep.subr.mxu0 0.0
    %295 = vmatpush1.msra.mxu0 0.0
    %296 = vmatprep.subr.mxu0 0.0
    %297 = vmatpush1.msra.mxu0 0.0
    %298 = vmatprep.subr.mxu0 0.0
    %299 = vmatpush1.msra.mxu0 0.0
    %300 = vmatprep.subr.mxu0 0.0
    %301 = vmatpush1.msra.mxu0 0.0
    %302 = vmatprep.subr.mxu0 0.0
    %303 = vmatpush1.msra.mxu0 0.0
    %304 = vmatprep.subr.mxu0 0.0
    %305 = vmatpush1.msra.mxu0 0.0
    %306 = vmatprep.subr.mxu0 0.0
    %307 = vmatpush1.msra.mxu0 0.0
    %308 = vmatprep.subr.mxu0 0.0
    %309 = vmatpush1.msra.mxu0 0.0
    %310 = vmatprep.subr.mxu0 0.0
    %311 = vmatpush1.msra.mxu0 0.0
    %312 = vmatprep.subr.mxu0 0.0
    %313 = vmatpush1.msra.mxu0 0.0
    %314 = vmatprep.subr.mxu0 0.0
    %315 = vmatpush1.msra.mxu0 0.0
    %316 = vmatprep.subr.mxu0 0.0
    %317 = vmatpush1.msra.mxu0 %v281
    %318 = vmatprep.subr.mxu0 0.0
    %319 = vmatpush1.msra.mxu0 %v280
    %320 = vmatprep.subr.mxu0 0.0
    %321 = vmatpush1.msra.mxu0 %v279
    %322 = vmatprep.subr.mxu0 0.0
    %323 = vmatpush1.msra.mxu0 %v278
    %324 = vmatprep.subr.mxu0 0.0
    %325 = vmatpush2.msra.mxu0 0.0
    %326 = vmatprep.subr.mxu0 0.0
    %327 = vmatpush2.msra.mxu0 0.0
    %328 = vmatprep.subr.mxu0 0.0
    %329 = vmatpush2.msra.mxu0 0.0
    %330 = vmatprep.subr.mxu0 0.0
    %331 = vmatpush2.msra.mxu0 0.0
    %332 = vmatprep.subr.mxu0 0.0
    %333 = vmatpush2.msra.mxu0 0.0
    %334 = vmatprep.subr.mxu0 0.0
    %335 = vmatpush2.msra.mxu0 0.0
    %336 = vmatprep.subr.mxu0 0.0
    %337 = vmatpush2.msra.mxu0 0.0
    %338 = vmatprep.subr.mxu0 0.0
    %339 = vmatpush2.msra.mxu0 0.0
    %340 = vmatprep.subr.mxu0 0.0
    %341 = vmatpush2.msra.mxu0 0.0
    %342 = vmatprep.subr.mxu0 0.0
    %343 = vmatpush2.msra.mxu0 0.0
    %344 = vmatprep.subr.mxu0 0.0
    %345 = vmatpush2.msra.mxu0 0.0
    %346 = vmatprep.subr.mxu0 0.0
    %347 = vmatpush2.msra.mxu0 0.0
    %348 = vmatprep.subr.mxu0 0.0
    %349 = vmatpush2.msra.mxu0 0.0
    %350 = vmatprep.subr.mxu0 0.0
    %351 = vmatpush2.msra.mxu0 0.0
    %352 = vmatprep.subr.mxu0 0.0
    %353 = vmatpush2.msra.mxu0 0.0
    %354 = vmatprep.subr.mxu0 0.0
    %355 = vmatpush2.msra.mxu0 0.0
    %356 = vmatprep.mubr.f32.mxu0 0.0
    %357 = vmatmul.mubr.f32.gmra.mxu0 %v290
    %v358 = vpop.f32.mrf.mxu0
    %v359 = vadd.f32 %v287, %v358
    %v360 = vpop.f32.mrf.mxu0
    %361 = vdwg.mxu0
    %362 = vst [vmem:[#allocation2] sm:$0xff] %v359
    // Predicated region
    $region50: #{tpu_custom_call.1} parent=1 // pred_check
      _
    $region51: #{tpu_custom_call.1} parent=1 // pred_check_branch
      %364 = sbr.rel (0) target = $region53
    $region52: #{tpu_custom_call.1} parent=1 // pred_region
      %s366 = ssub.s32 128, 128
      %367 = vsyncadd [#allocation3], %s366
      %s369 = sshll.u32 [#allocation2], 4
      %s370 = int_to_ptr.vmem [resolvable:$true] %s369
      %372 = dma.vmem_to_hbm [thread:$0]  %s370, 128, %s12, [#allocation3]
    $region53: #{tpu_custom_call.1} parent=1 // pred_fallthru
      _
    // Predicated region
    $region54: #{tpu_custom_call.1} parent=1 // pred_check
      _
    $region55: #{tpu_custom_call.1} parent=1 // pred_check_branch
      %374 = sbr.rel (0) target = $region57
    $region56: #{tpu_custom_call.1} parent=1 // pred_region
      %375 = dma.done [#allocation3], 128
    $region57: #{tpu_custom_call.1} parent=1 // pred_fallthru
      _
    %376 = vsyncpa [#allocation3], 1

</llo_original>
